<compile_context>
chip_gen: v7x
topology: tpu7x:2x2x1
jax: 0.10.0
libtpu: 0.0.40
codegen_flags: <defaults>
</compile_context>

<pallas_src>
import jax
import jax.numpy as jnp
from jax import lax
from jax.experimental import pallas as pl
from jax.experimental.pallas import tpu as pltpu

BN_EPS = 1e-5

_VMEM = pl.BlockSpec(memory_space=pltpu.MemorySpace.VMEM)

# ---------------------------------------------------------------------------
# pltpu.roll rotation-direction probe (cached per process).  The conv taps depend
# on the rotation convention matching jnp.roll; probe it once on the active
# backend so a flipped convention can never silently corrupt the convolution.
# ---------------------------------------------------------------------------
_ROLL_SIGN = None


def _probe_roll_kernel(x_ref, o_ref):
    o_ref[...] = pltpu.roll(x_ref[...], shift=1, axis=1)


def _roll_sign():
    global _ROLL_SIGN
    if _ROLL_SIGN is None:
        x = jnp.arange(8 * 128, dtype=jnp.float32).reshape(8, 128)
        y = pl.pallas_call(
            _probe_roll_kernel,
            out_shape=jax.ShapeDtypeStruct((8, 128), jnp.float32),
            in_specs=[_VMEM],
            out_specs=_VMEM,
        )(x)
        if bool(jnp.all(y == jnp.roll(x, 1, axis=1))):
            _ROLL_SIGN = 1          # pltpu.roll(x, s) == jnp.roll(x, s)
        elif bool(jnp.all(y == jnp.roll(x, -1, axis=1))):
            _ROLL_SIGN = -1         # opposite rotation convention
        else:
            raise AssertionError("unexpected pltpu.roll semantics")
    return _ROLL_SIGN


def _compute_dtype(c_in):
    """bf16 rolls/slab/matmul only on a real TPU backend (MXU-native); the
    interpret / CPU dot path does not support bf16 x bf16 = f32.  Keep Cin a
    multiple of 16 so bf16 sublane-sliced slab stores stay tile-aligned."""
    if jax.default_backend() == "tpu" and c_in % 16 == 0:
        return jnp.bfloat16
    return jnp.float32


# ---------------------------------------------------------------------------
# Fused kernel
# ---------------------------------------------------------------------------
def _make_basic_block_kernel(n_valid, wp, lanes, c_in, c_out, roll_sign,
                             compute_dtype):
    """Static closure: #valid pixels, padded row width, lane count, channel
    counts, roll sign, compute dtype."""
    # Tap offsets along the flattened (n, h_pad, w_pad) pixel axis, in (kh, kw)
    # row-major order -- must match the weight-matrix row order in the wrapper.
    tap_offsets = [dh * wp + dw for dh in (-1, 0, 1) for dw in (-1, 0, 1)]
    inv_n = 1.0 / n_valid

    def conv3x3(act, w_ref, patches_ref, cin):
        # act: (cin, L) f32, exact zeros at every non-interior position, so the
        # padding taps read true zeros and roll wrap-around only lands on
        # positions excluded from the BN statistics / final output.
        act_c = act.astype(compute_dtype)     # one cast, before the 8 rolls
        for t, d in enumerate(tap_offsets):
            if d == 0:
                tap = act_c
            else:
                tap = pltpu.roll(act_c, shift=(roll_sign * -d) % lanes, axis=1)
            patches_ref[t * cin:(t + 1) * cin, :] = tap
        # Single MXU matmul, K = 9*cin, f32 accumulation.
        return jnp.dot(w_ref[...], patches_ref[...],
                       preferred_element_type=jnp.float32)        # (cout, L) f32

    def bn_stats(acc, mask_col_ref):
        # PyTorch training-mode BN statistics (batch mean / biased var over
        # N*H*W per channel).  Masked sums as MXU mat-vecs against the interior
        # mask column: ring/pad garbage is excluded without a (Cout,L) VPU pass
        # and the cross-lane reduction moves onto the otherwise-idle MXU.
        mask_col = mask_col_ref[...]                              # (L, 1) f32
        s = jnp.dot(acc, mask_col, preferred_element_type=jnp.float32)
        sq = jnp.dot(acc * acc, mask_col, preferred_element_type=jnp.float32)
        mean = s * inv_n
        var = sq * inv_n - mean * mean
        return mean, var

    def kernel(x_ref, mask_row_ref, mask_col_ref,
               w1_ref, g1_ref, b1_ref, w2_ref, g2_ref, b2_ref,
               o_ref, patches_ref):
        x = x_ref[...]                                   # (Cin, L) f32, zero ring

        # --- stage 1: conv1 -> BN1 -> ReLU ---
        acc1 = conv3x3(x, w1_ref, patches_ref, c_in)
        mean1, var1 = bn_stats(acc1, mask_col_ref)
        scale1 = g1_ref[...] * lax.rsqrt(var1 + BN_EPS)
        shift1 = b1_ref[...] - mean1 * scale1
        # Re-zero the padding ring: stage-2 conv taps must read exact zeros.
        h1 = jnp.maximum(acc1 * scale1 + shift1, 0.0) * mask_row_ref[...]

        # --- stage 2: conv2 -> BN2 -> +residual -> ReLU ---
        acc2 = conv3x3(h1, w2_ref, patches_ref, c_out)
        mean2, var2 = bn_stats(acc2, mask_col_ref)
        scale2 = g2_ref[...] * lax.rsqrt(var2 + BN_EPS)
        shift2 = b2_ref[...] - mean2 * scale2
        # No output mask: ring/pad lanes are sliced away in the wrapper.
        o_ref[...] = jnp.maximum(acc2 * scale2 + shift2 + x, 0.0)

    return kernel


# ---------------------------------------------------------------------------
# Wrapper
# ---------------------------------------------------------------------------
def basic_block_forward(x_nchw, params):
    """BasicBlock(inplanes=planes, stride=1, downsample=None), training-mode BN."""
    n, c_in, h, w = x_nchw.shape
    c_out = params["w1"].shape[-1]
    assert c_in == c_out, "identity residual requires inplanes == planes"
    assert c_in % 8 == 0, "channel count must be a multiple of the sublane tile (8)"
    hp, wp = h + 2, w + 2
    l_valid = n * hp * wp
    lanes = ((l_valid + 127) // 128) * 128            # lane-dense: multiple of 128
    n_valid = float(n * h * w)
    compute_dtype = _compute_dtype(c_in)

    # --- wrapper-side layout plumbing (tiny at these shapes) ---
    # TODO(synk): for real ResNet shapes fold the pad/transpose into the kernel
    # (DMA unpadded rows into a pre-zeroed VMEM tile) and keep the (C, L) layout
    # between consecutive BasicBlocks instead of round-tripping NCHW via HBM.
    x_c = jnp.transpose(x_nchw.astype(jnp.float32), (1, 0, 2, 3))      # (C, N, H, W)
    x_pad = jnp.pad(x_c, ((0, 0), (0, 0), (1, 1), (1, 1)))             # (C, N, Hp, Wp)
    x_flat = jnp.pad(x_pad.reshape(c_in, l_valid),
                     ((0, 0), (0, lanes - l_valid)))                    # (C, L)

    interior = jnp.zeros((n, hp, wp), jnp.float32).at[:, 1:hp - 1, 1:wp - 1].set(1.0)
    mask_flat = jnp.pad(interior.reshape(l_valid), (0, lanes - l_valid))
    mask_row = mask_flat.reshape(1, lanes)            # for the stage-1 ring re-zero
    mask_col = mask_flat.reshape(lanes, 1)            # for the BN mat-vec reductions

    def w_mat(w_hwio):   # (3,3,Cin,Cout) -> (Cout, 9*Cin) in the compute dtype
        cin, cout = w_hwio.shape[2], w_hwio.shape[3]
        return jnp.transpose(w_hwio.reshape(9 * cin, cout)).astype(compute_dtype)

    def col(v):          # (C,) -> (C, 1) f32; broadcasts along lanes in-kernel
        return v.reshape(-1, 1).astype(jnp.float32)

    kernel = _make_basic_block_kernel(n_valid, wp, lanes, c_in, c_out,
                                      _roll_sign(), compute_dtype)

    # Single grid-less invocation: the whole toy problem is VMEM-resident and BN
    # batch statistics couple every pixel.
    # TODO(synk): for real ResNet shapes add an image-aligned grid with two-pass
    # BN (pass 1: conv + per-channel sum/sum-sq accumulated over an "arbitrary"
    # axis; pass 2: normalize + ReLU + conv2), mark the image axis "parallel" so
    # v7x uses both TensorCores, and size the lane tile per generation
    # (~half on v7x's 64 MiB VMEM vs v5e/v6e's 128 MiB, with vmem_limit_bytes
    # raised accordingly).  bf16 output / inter-block activation is a further
    # store-bandwidth win once blocks are chained.
    out_flat = pl.pallas_call(
        kernel,
        out_shape=jax.ShapeDtypeStruct((c_out, lanes), jnp.float32),
        in_specs=[_VMEM] * 9,
        out_specs=_VMEM,
        scratch_shapes=[pltpu.VMEM((9 * c_in, lanes), compute_dtype)],
    )(x_flat, mask_row, mask_col,
      w_mat(params["w1"]), col(params["g1"]), col(params["b1"]),
      w_mat(params["w2"]), col(params["g2"]), col(params["b2"]))

    out = out_flat[:, :l_valid].reshape(c_out, n, hp, wp)[:, :, 1:hp - 1, 1:wp - 1]
    return jnp.transpose(out, (1, 0, 2, 3))           # back to NCHW


def init_params(key, inplanes, planes):
    k1, k2, k3, k4, k5, k6 = jax.random.split(key, 6)
    std1 = (2.0 / (inplanes * 9)) ** 0.5
    std2 = (2.0 / (planes * 9)) ** 0.5
    return {
        # conv weights generated directly in HWIO (PyTorch stores OIHW).
        "w1": jax.random.normal(k1, (3, 3, inplanes, planes), jnp.float32) * std1,
        "w2": jax.random.normal(k2, (3, 3, planes, planes), jnp.float32) * std2,
        "g1": 1.0 + 0.1 * jax.random.normal(k3, (planes,), jnp.float32),
        "b1": 0.1 * jax.random.normal(k4, (planes,), jnp.float32),
        "g2": 1.0 + 0.1 * jax.random.normal(k5, (planes,), jnp.float32),
        "b2": 0.1 * jax.random.normal(k6, (planes,), jnp.float32),
    }


def _reference_forward(x, params):
    """Pure-JAX f32 reference of the BasicBlock forward (training-mode BN)."""
    def conv(hh, w_hwio):
        return lax.conv_general_dilated(
            hh, w_hwio, window_strides=(1, 1), padding=((1, 1), (1, 1)),
            dimension_numbers=("NCHW", "HWIO", "NCHW"))

    def bn(hh, g, b):
        mean = jnp.mean(hh, axis=(0, 2, 3), keepdims=True)
        var = jnp.mean(jnp.square(hh - mean), axis=(0, 2, 3), keepdims=True)
        return ((hh - mean) * lax.rsqrt(var + BN_EPS)
                * g.reshape(1, -1, 1, 1) + b.reshape(1, -1, 1, 1))

    out = jnp.maximum(bn(conv(x, params["w1"]), params["g1"], params["b1"]), 0.0)
    out = bn(conv(out, params["w2"]), params["g2"], params["b2"]) + x
    return jnp.maximum(out, 0.0)


if __name__ == "__main__":
    key = jax.random.PRNGKey(0)
    kx, kp = jax.random.split(key)

    N, C, H, W = 2, 16, 16, 16          # inplanes == planes, stride=1, downsample=None
    x = jax.random.normal(kx, (N, C, H, W), jnp.float32)
    params = init_params(kp, C, C)

    _roll_sign()                        # probe rotation convention outside jit tracing

    y = jax.jit(basic_block_forward)(x, params)
    y = jax.block_until_ready(y)

    y_ref = _reference_forward(x, params)
    max_err = float(jnp.max(jnp.abs(y - y_ref)))

    # f32 (interpret / non-TPU) path is near-exact; bf16 MXU path gets a looser bound.
    tol = 0.1 if _compute_dtype(C) == jnp.bfloat16 else 1e-2

    assert y.shape == (N, C, H, W)
    assert bool(jnp.all(jnp.isfinite(y)))
    assert bool(jnp.all(y >= 0.0))      # final ReLU
    assert max_err < tol, f"mismatch vs f32 reference: {max_err}"
    print("KERNEL_OK")
</pallas_src>

<mosaic_0001>
module attributes {stable_mosaic.version = 11 : i64} {
  func.func @_probe_roll_kernel(%arg0: memref<8x128xf32, #tpu.memory_space<vmem>>, %arg1: memref<8x128xf32, #tpu.memory_space<vmem>>) attributes {dimension_semantics = [], scalar_prefetch = 0 : i64, scratch_operands = 0 : i64, tpu.core_type = #tpu.core_type<tc>} {
    %c0 = arith.constant 0 : index
    %c0_0 = arith.constant 0 : index
    %0 = vector.load %arg0[%c0, %c0_0] : memref<8x128xf32, #tpu.memory_space<vmem>>, vector<8x128xf32>
    %c1_i32 = arith.constant 1 : i32
    %1 = tpu.dynamic_rotate %0 by %c1_i32 dim 1 : vector<8x128xf32>, i32 -> vector<8x128xf32>
    %c0_1 = arith.constant 0 : index
    %c0_2 = arith.constant 0 : index
    %2 = vector.load %arg1[%c0_1, %c0_2] : memref<8x128xf32, #tpu.memory_space<vmem>>, vector<8x128xf32>
    tpu.vector_store %arg1[%c0_1, %c0_2], %1 {strides = array<i32>} : memref<8x128xf32, #tpu.memory_space<vmem>>, vector<8x128xf32>,
    return
  }
}

</mosaic_0001>

<llo_original>
// kernel: tpu_custom_call.1
$region0: #{tpu_custom_call.1}
  #allocation0 [shape = 'u32[]', space=smem, size = 0x4, offset = 0x4, fixed_abs, tag = 'smem constant byte address 0x4 - core index']
  #allocation1 [shape = 'u32[144,128]{1,0:T(1,128)}', space=vmem, size = 0x12000, scoped, tag = 'internal scratch']
  %s0 = inlined_call_operand.hbm [shape: f32[8,128], index: 0, kind: input, shape index: {}]
  %s1 = inlined_call_operand.hbm [shape: f32[8,128], index: 1, kind: output, shape index: {}]
  %s2 = sld [smem:[#allocation0]]
  $region18: #{tpu_custom_call.1} parent=0
    _
  %s4 = ssub.s32 1, %s2
  %s5 = scalar_select 0, %s4, %s2
  $region1: #{tpu_custom_call.1} parent=0
    #allocation2 [shape = 'u8[4096]{0}', space=vmem, size = 0x1000, scoped, tag = 'input window, operand 0, single buffered']
    #allocation3 [shape = 's32[1]{0}', space=sflag, size = 0x4, scoped, tag = 'scoped memory for tpu_custom_call.1']
    #allocation4 [shape = 's32[1]{0}', space=sflag, size = 0x4, scoped, tag = 'scoped memory for tpu_custom_call.1']
    #allocation5 [shape = 'u8[4096]{0}', space=vmem, size = 0x1000, scoped, tag = 'output window, operand 0, single buffered']
    %6 = vsyncpa [#allocation3], 0
    %7 = vsyncpa [#allocation4], 0
    // Predicated region
    $region2: #{tpu_custom_call.1} parent=1 // pred_check
      _
    $region3: #{tpu_custom_call.1} parent=1 // pred_check_branch
      %9 = sbr.rel (0) target = $region5
    $region4: #{tpu_custom_call.1} parent=1 // pred_region
      %s11 = ssub.s32 128, 128
      %12 = vsyncadd [#allocation3], %s11
      %s14 = sshll.u32 [#allocation2], 4
      %s15 = int_to_ptr.vmem [resolvable:$true] %s14
      %17 = dma.hbm_to_vmem [thread:$0]  %s0, 128, %s15, [#allocation3]
    $region5: #{tpu_custom_call.1} parent=1 // pred_fallthru
      _
    // Predicated region
    $region6: #{tpu_custom_call.1} parent=1 // pred_check
      _
    $region7: #{tpu_custom_call.1} parent=1 // pred_check_branch
      %19 = sbr.rel (0) target = $region9
    $region8: #{tpu_custom_call.1} parent=1 // pred_region
      %20 = dma.done [#allocation3], 128
    $region9: #{tpu_custom_call.1} parent=1 // pred_fallthru
      _
    %v21 = vld [vmem:[#allocation2] sm:$0xff]
    %22 = vrot.lane.b32.xlu0 %v21, 1
    %v23 = vpop.permute.xlu0 %22
    %24 = vst [vmem:[#allocation5] sm:$0xff] %v23
    // Predicated region
    $region10: #{tpu_custom_call.1} parent=1 // pred_check
      _
    $region11: #{tpu_custom_call.1} parent=1 // pred_check_branch
      %26 = sbr.rel (0) target = $region13
    $region12: #{tpu_custom_call.1} parent=1 // pred_region
      %s28 = ssub.s32 128, 128
      %29 = vsyncadd [#allocation4], %s28
      %s31 = sshll.u32 [#allocation5], 4
      %s32 = int_to_ptr.vmem [resolvable:$true] %s31
      %34 = dma.vmem_to_hbm [thread:$0]  %s32, 128, %s1, [#allocation4]
    $region13: #{tpu_custom_call.1} parent=1 // pred_fallthru
      _
    // Predicated region
    $region14: #{tpu_custom_call.1} parent=1 // pred_check
      _
    $region15: #{tpu_custom_call.1} parent=1 // pred_check_branch
      %36 = sbr.rel (0) target = $region17
    $region16: #{tpu_custom_call.1} parent=1 // pred_region
      %37 = dma.done [#allocation4], 128
    $region17: #{tpu_custom_call.1} parent=1 // pred_fallthru
      _
    %38 = vsyncpa [#allocation3], 1
    %39 = vsyncpa [#allocation4], 1

</llo_original>
